<compile_context>
chip_gen: v7x
topology: tpu7x:2x2x1
jax: 0.10.0
libtpu: 0.0.40
codegen_flags: <defaults>
</compile_context>

<pallas_src>
import functools
import math

import jax
import jax.numpy as jnp
from jax.experimental import pallas as pl
from jax.experimental.pallas import tpu as pltpu


def _round_up(x, m):
    return ((x + m - 1) // m) * m


def _plan_dim(size, max_tile, align):
    """Pick (tile, padded_extent) for one dim: tile is a multiple of `align`,
    <= max_tile; prefer a tile that exactly divides the aligned size."""
    padded = _round_up(size, align)
    cap = min(_round_up(max_tile, align), padded)
    # Largest tile in (cap/2, cap] that divides the aligned size -> no extra padding.
    for t in range(cap, cap // 2, -align):
        if padded % t == 0:
            return t, padded
    # Otherwise balance the block count; padding is < align per block.
    nblk = -(-padded // cap)
    t = _round_up(-(-padded // nblk), align)
    return t, t * nblk


def _lora_linear_kernel(x_ref, wt_ref, b_ref, xa_ref, lb_ref, o_ref, acc_ref):
    """One (i, j, k) grid step.

    x_ref  : (tm, tk)  activation tile (compute dtype)
    wt_ref : (tk, tn)  pre-transposed weight tile W^T (compute dtype)
    b_ref  : (1,  tn)  bias tile (f32)
    xa_ref : (tm, Rp)  precomputed x @ lora_A tile (f32), k-invariant
    lb_ref : (Rp, tn)  lora_B tile with alpha/rank folded in (f32), k-invariant
    o_ref  : (tm, tn)  output tile
    acc_ref: (tm, tn)  f32 accumulator, lives across k
    """
    k = pl.program_id(2)

    @pl.when(k == 0)
    def _():
        acc_ref[...] = jnp.zeros_like(acc_ref)

    acc_ref[...] += jnp.dot(x_ref[...], wt_ref[...],
                            preferred_element_type=jnp.float32)

    @pl.when(k == pl.num_programs(2) - 1)
    def _():
        lora = jnp.dot(xa_ref[...], lb_ref[...],
                       preferred_element_type=jnp.float32)
        o_ref[...] = (acc_ref[...] + lora + b_ref[...]).astype(o_ref.dtype)


def prepare_lora_linear_params(weight, bias, lora_A, lora_B, *, alpha=1.0, rank=4,
                               tn=1024, tk=512, compute_dtype=jnp.bfloat16):
    """One-time parameter prep: transpose, scale-fold, dtype-cast, zero-pad.

    weight: (N, K) PyTorch layout, bias: (N,), lora_A: (K, R), lora_B: (R, N).
    Do this once per model (not per forward call).
    """
    N, K = weight.shape
    R = lora_A.shape[1]
    scaling = float(alpha) / float(rank)

    _, Np = _plan_dim(N, tn, 128)
    _, Kp = _plan_dim(K, tk, 128)
    Rp = _round_up(R, 128)

    # Weight pre-transposed ONCE to (K, N): kernel does a plain NN-form matmul,
    # so no per-step in-kernel transpose of the weight tile is possible.
    wT = jnp.zeros((Kp, Np), compute_dtype).at[:K, :N].set(
        weight.T.astype(compute_dtype))
    b2 = jnp.zeros((1, Np), jnp.float32).at[0, :N].set(bias.astype(jnp.float32))
    # lora_A padded on the rank dim only; consumed by the hoisted wrapper GEMM.
    a_p = jnp.zeros((K, Rp), jnp.float32).at[:, :R].set(lora_A.astype(jnp.float32))
    # alpha/rank folded into lora_B once; kept f32 for the small finalize matmul.
    lb_p = jnp.zeros((Rp, Np), jnp.float32).at[:R, :N].set(
        lora_B.astype(jnp.float32) * scaling)
    return dict(wT=wT, b2=b2, a_p=a_p, lb_p=lb_p, N=N)


@functools.partial(jax.jit, static_argnames=("N", "tm", "tn", "tk"))
def _lora_linear_apply(x, wT, b2, a_p, lb_p, *, N, tm, tn, tk):
    orig_dtype = x.dtype
    lead = x.shape[:-1]
    K = x.shape[-1]
    Kp, Np = wT.shape
    Rp = a_p.shape[1]
    compute_dtype = wT.dtype

    x2d = x.reshape(-1, K)
    M = x2d.shape[0]

    # --- tile plan (all python / trace-time) ---
    tm_eff, Mp = _plan_dim(M, tm, 16)
    tn_eff, Np_chk = _plan_dim(N, tn, 128)
    tk_eff, Kp_chk = _plan_dim(K, tk, 128)
    assert Np_chk == Np and Kp_chk == Kp, (
        "params were prepared with different tn/tk; re-run prepare_lora_linear_params")

    # LoRA left GEMM hoisted out of the kernel grid: tiny (M x K x R) GEMM done
    # once per call in f32, instead of once per (j, k) step inside the kernel.
    xa = jnp.dot(x2d.astype(jnp.float32), a_p, preferred_element_type=jnp.float32)

    # Pad activations only when actually misaligned (aligned case: no extra copies).
    xk = x2d.astype(compute_dtype)
    if Mp != M or Kp != K:
        xk = jnp.zeros((Mp, Kp), compute_dtype).at[:M, :K].set(xk)
    if Mp != M:
        xa = jnp.zeros((Mp, Rp), jnp.float32).at[:M, :].set(xa)

    grid = (Mp // tm_eff, Np // tn_eff, Kp // tk_eff)

    # Per-step VMEM working set (double-buffered inputs/outputs + f32 accumulator);
    # declare it explicitly (v5e default scoped limit is only 16 MiB).
    csz = jnp.dtype(compute_dtype).itemsize
    osz = jnp.dtype(orig_dtype).itemsize
    est = (2 * tm_eff * tk_eff * csz + 2 * tk_eff * tn_eff * csz
           + 2 * tm_eff * Rp * 4 + 2 * Rp * tn_eff * 4 + 2 * tn_eff * 4
           + 2 * tm_eff * tn_eff * osz + tm_eff * tn_eff * 4)
    vmem_limit = int(min(max(est + (8 << 20), 32 << 20), 48 << 20))

    out = pl.pallas_call(
        _lora_linear_kernel,
        out_shape=jax.ShapeDtypeStruct((Mp, Np), orig_dtype),
        grid_spec=pltpu.PrefetchScalarGridSpec(
            num_scalar_prefetch=0,
            grid=grid,
            in_specs=[
                pl.BlockSpec((tm_eff, tk_eff), lambda i, j, k: (i, k)),  # x
                pl.BlockSpec((tk_eff, tn_eff), lambda i, j, k: (k, j)),  # W^T (K,N)
                pl.BlockSpec((1, tn_eff), lambda i, j, k: (0, j)),       # bias
                pl.BlockSpec((tm_eff, Rp), lambda i, j, k: (i, 0)),      # x @ lora_A
                pl.BlockSpec((Rp, tn_eff), lambda i, j, k: (0, j)),      # lora_B*scale
            ],
            out_specs=pl.BlockSpec((tm_eff, tn_eff), lambda i, j, k: (i, j)),
            scratch_shapes=[pltpu.VMEM((tm_eff, tn_eff), jnp.float32)],  # base acc
        ),
        compiler_params=pltpu.CompilerParams(
            dimension_semantics=("parallel", "parallel", "arbitrary"),
            vmem_limit_bytes=vmem_limit),
    )(xk, wT, b2, xa, lb_p)

    if Mp != M or Np != N:
        out = out[:M, :N]
    return out.reshape(*lead, N)


def lora_linear_apply(x, params, *, tm=1024, tn=1024, tk=512):
    """Forward with pre-prepared (padded / transposed / cast) parameters."""
    return _lora_linear_apply(x, params["wT"], params["b2"], params["a_p"],
                              params["lb_p"], N=params["N"], tm=tm, tn=tn, tk=tk)


def lora_linear(x, weight, bias, lora_A, lora_B, *, alpha=1.0, rank=4,
                tm=1024, tn=1024, tk=512, compute_dtype=None):
    """One-shot convenience wrapper (prep + apply).  For repeated calls, run
    prepare_lora_linear_params once and reuse lora_linear_apply."""
    if compute_dtype is None:
        compute_dtype = jnp.bfloat16 if x.dtype == jnp.float32 else x.dtype
    params = prepare_lora_linear_params(weight, bias, lora_A, lora_B,
                                        alpha=alpha, rank=rank, tn=tn, tk=tk,
                                        compute_dtype=compute_dtype)
    return lora_linear_apply(x, params, tm=tm, tn=tn, tk=tk)


def lora_linear_ref(x, weight, bias, lora_A, lora_B, *, alpha=1.0, rank=4):
    scaling = float(alpha) / float(rank)
    return x @ weight.T + bias + (x @ lora_A @ lora_B) * scaling


def _make_params(key, in_features, out_features, rank):
    """Deterministic PyTorch-style init (kaiming_uniform / uniform)."""
    k_w, k_b, k_a, k_lb = jax.random.split(key, 4)
    w_bound = math.sqrt(6.0 / ((1.0 + 5.0) * in_features))
    weight = jax.random.uniform(k_w, (out_features, in_features),
                                minval=-w_bound, maxval=w_bound, dtype=jnp.float32)
    b_bound = 1.0 / math.sqrt(in_features)
    bias = jax.random.uniform(k_b, (out_features,),
                              minval=-b_bound, maxval=b_bound, dtype=jnp.float32)
    a_bound = math.sqrt(6.0 / ((1.0 + 5.0) * rank))
    lora_A = jax.random.uniform(k_a, (in_features, rank),
                                minval=-a_bound, maxval=a_bound, dtype=jnp.float32)
    # Module inits lora_B to zeros; use random values so the LoRA path (and the
    # alpha/rank scaling) is actually verified numerically.
    lora_B = 0.1 * jax.random.normal(k_lb, (rank, out_features), dtype=jnp.float32)
    return weight, bias, lora_A, lora_B


if __name__ == "__main__":
    key = jax.random.PRNGKey(0)
    k1, k2, k3, k4 = jax.random.split(key, 4)

    # ---- Test 1: unaligned shapes, explicit f32 compute, multi-step (3,2,2) grid ----
    batch, seq, in_f, out_f, rank, alpha = 2, 24, 192, 160, 4, 1.0
    x1 = jax.random.normal(k1, (batch, seq, in_f), dtype=jnp.float32)
    w1, b1, a1, lb1 = _make_params(k2, in_f, out_f, rank)

    ref1 = lora_linear_ref(x1, w1, b1, a1, lb1, alpha=alpha, rank=rank)
    out1 = lora_linear(x1, w1, b1, a1, lb1, alpha=alpha, rank=rank,
                       tm=16, tn=128, tk=128, compute_dtype=jnp.float32)
    jax.block_until_ready(out1)
    assert out1.shape == ref1.shape
    assert jnp.allclose(out1, ref1, atol=2e-5, rtol=2e-5), "f32 mismatch vs reference"

    # ---- Test 2: aligned shapes, prepare-once + apply path, default bf16 compute ----
    batch2, seq2, in_f2, out_f2 = 2, 128, 256, 256
    x2 = jax.random.normal(k3, (batch2, seq2, in_f2), dtype=jnp.float32)
    w2, b2, a2, lb2 = _make_params(k4, in_f2, out_f2, rank)

    params2 = prepare_lora_linear_params(w2, b2, a2, lb2, alpha=alpha, rank=rank,
                                         compute_dtype=jnp.bfloat16)
    ref2 = lora_linear_ref(x2, w2, b2, a2, lb2, alpha=alpha, rank=rank)
    out2 = lora_linear_apply(x2, params2)  # default tm=1024, tn=1024, tk=512 (clamped)
    jax.block_until_ready(out2)
    assert out2.shape == ref2.shape
    assert jnp.allclose(out2, ref2, atol=5e-2, rtol=5e-2), "bf16 mismatch vs reference"

    print("KERNEL_OK")
</pallas_src>

<mosaic_0001>
module attributes {stable_mosaic.version = 11 : i64} {
  func.func @_lora_linear_kernel(%arg0: i32, %arg1: i32, %arg2: i32, %arg3: memref<16x128xf32, #tpu.memory_space<vmem>>, %arg4: memref<128x128xf32, #tpu.memory_space<vmem>>, %arg5: memref<1x128xf32, #tpu.memory_space<vmem>>, %arg6: memref<16x128xf32, #tpu.memory_space<vmem>>, %arg7: memref<128x128xf32, #tpu.memory_space<vmem>>, %arg8: memref<16x128xf32, #tpu.memory_space<vmem>>, %arg9: memref<16x128xf32, #tpu.memory_space<vmem>>) attributes {dimension_semantics = [#tpu.dimension_semantics<parallel>, #tpu.dimension_semantics<parallel>, #tpu.dimension_semantics<arbitrary>], iteration_bounds = array<i64: 3, 2, 2>, scalar_prefetch = 0 : i64, scratch_operands = 1 : i64, tpu.core_type = #tpu.core_type<tc>, window_params = [{transform_indices = @transform_0, window_bounds = array<i64: 16, 128>}, {transform_indices = @transform_1, window_bounds = array<i64: 128, 128>}, {transform_indices = @transform_2, window_bounds = array<i64: 1, 128>}, {transform_indices = @transform_3, window_bounds = array<i64: 16, 128>}, {transform_indices = @transform_4, window_bounds = array<i64: 128, 128>}, {transform_indices = @transform_5, window_bounds = array<i64: 16, 128>}]} {
    %c0_i32 = arith.constant 0 : i32
    %0 = arith.cmpi eq, %arg2, %c0_i32 : i32
    %1 = arith.extui %0 : i1 to i32
    %c0_i32_0 = arith.constant 0 : i32
    %2 = arith.cmpi ne, %1, %c0_i32_0 : i32
    scf.if %2 {
      %cst_9 = arith.constant 0.000000e+00 : f32
      %12 = vector.broadcast %cst_9 : f32 to vector<16x128xf32>
      %c0_10 = arith.constant 0 : index
      %c0_11 = arith.constant 0 : index
      %13 = vector.load %arg9[%c0_10, %c0_11] : memref<16x128xf32, #tpu.memory_space<vmem>>, vector<16x128xf32>
      tpu.vector_store %arg9[%c0_10, %c0_11], %12 {strides = array<i32>} : memref<16x128xf32, #tpu.memory_space<vmem>>, vector<16x128xf32>,
    } else {
    }
    %c0 = arith.constant 0 : index
    %c0_1 = arith.constant 0 : index
    %3 = vector.load %arg9[%c0, %c0_1] : memref<16x128xf32, #tpu.memory_space<vmem>>, vector<16x128xf32>
    %c0_2 = arith.constant 0 : index
    %c0_3 = arith.constant 0 : index
    %4 = vector.load %arg3[%c0_2, %c0_3] : memref<16x128xf32, #tpu.memory_space<vmem>>, vector<16x128xf32>
    %c0_4 = arith.constant 0 : index
    %c0_5 = arith.constant 0 : index
    %5 = vector.load %arg4[%c0_4, %c0_5] : memref<128x128xf32, #tpu.memory_space<vmem>>, vector<128x128xf32>
    %cst = arith.constant dense<0.000000e+00> : vector<16x128xf32>
    %6 = tpu.matmul %4, %5, %cst {dimension_numbers = #tpu.dot_dimension_numbers<[1], [0], [0], [1], [0, 0, 1, 1], [], []>} : vector<16x128xf32>, vector<128x128xf32>, vector<16x128xf32> -> vector<16x128xf32>
    %7 = arith.addf %3, %6 : vector<16x128xf32>
    %c0_6 = arith.constant 0 : index
    %c0_7 = arith.constant 0 : index
    %8 = vector.load %arg9[%c0_6, %c0_7] : memref<16x128xf32, #tpu.memory_space<vmem>>, vector<16x128xf32>
    tpu.vector_store %arg9[%c0_6, %c0_7], %7 {strides = array<i32>} : memref<16x128xf32, #tpu.memory_space<vmem>>, vector<16x128xf32>,
    %c1_i32 = arith.constant 1 : i32
    %9 = arith.cmpi eq, %arg2, %c1_i32 : i32
    %10 = arith.extui %9 : i1 to i32
    %c0_i32_8 = arith.constant 0 : i32
    %11 = arith.cmpi ne, %10, %c0_i32_8 : i32
    scf.if %11 {
      %c0_9 = arith.constant 0 : index
      %c0_10 = arith.constant 0 : index
      %12 = vector.load %arg6[%c0_9, %c0_10] : memref<16x128xf32, #tpu.memory_space<vmem>>, vector<16x128xf32>
      %c0_11 = arith.constant 0 : index
      %c0_12 = arith.constant 0 : index
      %13 = vector.load %arg7[%c0_11, %c0_12] : memref<128x128xf32, #tpu.memory_space<vmem>>, vector<128x128xf32>
      %cst_13 = arith.constant dense<0.000000e+00> : vector<16x128xf32>
      %14 = tpu.matmul %12, %13, %cst_13 {dimension_numbers = #tpu.dot_dimension_numbers<[1], [0], [0], [1], [0, 0, 1, 1], [], []>} : vector<16x128xf32>, vector<128x128xf32>, vector<16x128xf32> -> vector<16x128xf32>
      %c0_14 = arith.constant 0 : index
      %c0_15 = arith.constant 0 : index
      %15 = vector.load %arg9[%c0_14, %c0_15] : memref<16x128xf32, #tpu.memory_space<vmem>>, vector<16x128xf32>
      %16 = arith.addf %15, %14 : vector<16x128xf32>
      %c0_16 = arith.constant 0 : index
      %c0_17 = arith.constant 0 : index
      %17 = vector.load %arg5[%c0_16, %c0_17] : memref<1x128xf32, #tpu.memory_space<vmem>>, vector<1x128xf32>
      %18 = vector.broadcast %17 : vector<1x128xf32> to vector<16x128xf32>
      %19 = arith.addf %16, %18 : vector<16x128xf32>
      %c0_18 = arith.constant 0 : index
      %c0_19 = arith.constant 0 : index
      %20 = vector.load %arg8[%c0_18, %c0_19] : memref<16x128xf32, #tpu.memory_space<vmem>>, vector<16x128xf32>
      tpu.vector_store %arg8[%c0_18, %c0_19], %19 {strides = array<i32>} : memref<16x128xf32, #tpu.memory_space<vmem>>, vector<16x128xf32>,
    } else {
    }
    return
  }
  func.func @transform_0(%arg0: i32, %arg1: i32, %arg2: i32) -> (i32, i32) {
    %c0_i32 = arith.constant 0 : i32
    return %arg0, %arg2 : i32, i32
  }
  func.func @transform_1(%arg0: i32, %arg1: i32, %arg2: i32) -> (i32, i32) {
    %c0_i32 = arith.constant 0 : i32
    return %arg2, %arg1 : i32, i32
  }
  func.func @transform_2(%arg0: i32, %arg1: i32, %arg2: i32) -> (i32, i32) {
    %c0_i32 = arith.constant 0 : i32
    %c0_i32_0 = arith.constant 0 : i32
    return %c0_i32, %arg1 : i32, i32
  }
  func.func @transform_3(%arg0: i32, %arg1: i32, %arg2: i32) -> (i32, i32) {
    %c0_i32 = arith.constant 0 : i32
    %c0_i32_0 = arith.constant 0 : i32
    return %arg0, %c0_i32 : i32, i32
  }
  func.func @transform_4(%arg0: i32, %arg1: i32, %arg2: i32) -> (i32, i32) {
    %c0_i32 = arith.constant 0 : i32
    %c0_i32_0 = arith.constant 0 : i32
    return %c0_i32, %arg1 : i32, i32
  }
  func.func @transform_5(%arg0: i32, %arg1: i32, %arg2: i32) -> (i32, i32) {
    %c0_i32 = arith.constant 0 : i32
    return %arg0, %arg1 : i32, i32
  }
}

</mosaic_0001>

<llo_original>
// kernel: _lora_linear_apply.1
$region0: #{_lora_linear_apply.1}
  #allocation0 [shape = 'u32[]', space=smem, size = 0x4, offset = 0x4, fixed_abs, tag = 'smem constant byte address 0x4 - core index']
  #allocation1 [shape = 'u32[144,128]{1,0:T(1,128)}', space=vmem, size = 0x12000, scoped, tag = 'internal scratch']
  #allocation2 [shape = 'f32[16,128]{1,0:T(8,128)}', space=vmem, size = 0x2000, scoped, tag = 'scratch operand']
  %s0 = inlined_call_operand.vmem [shape: f32[48,256], index: 0, kind: input, shape index: {}]
  %s1 = inlined_call_operand.vmem [shape: f32[256,256], index: 1, kind: input, shape index: {}]
  %s2 = inlined_call_operand.vmem [shape: f32[1,256], index: 2, kind: input, shape index: {}]
  %s3 = inlined_call_operand.vmem [shape: f32[48,128], index: 3, kind: input, shape index: {}]
  %s4 = inlined_call_operand.hbm [shape: f32[128,256], index: 4, kind: input, shape index: {}]
  %s5 = inlined_call_operand.hbm [shape: f32[48,256], index: 5, kind: output, shape index: {}]
  %s6 = sld [smem:[#allocation0]]
  $region141: #{_lora_linear_apply.1} parent=0
    _
  %s8 = ssub.s32 1, %s6
  %s9 = scalar_select 0, %s8, %s6
  $region1: #{_lora_linear_apply.1} parent=0
    #allocation3 [shape = 'u8[16384]{0}', space=vmem, size = 0x4000, scoped, tag = 'input window, operand 0']
    #allocation4 [shape = 'u8[131072]{0}', space=vmem, size = 0x20000, scoped, tag = 'input window, operand 1']
    #allocation5 [shape = 'u8[131072]{0}', space=vmem, size = 0x20000, scoped, tag = 'input window, operand 4']
    #allocation6 [shape = 's32[2]{0}', space=sflag, size = 0x8, scoped, tag = 'scoped memory for _lora_linear_apply.1']
    #allocation7 [shape = 's32[2]{0}', space=sflag, size = 0x8, scoped, tag = 'scoped memory for _lora_linear_apply.1']
    #allocation8 [shape = 'u8[16384]{0}', space=vmem, size = 0x4000, scoped, tag = 'output window, operand 0']
    %10 = vsyncpa [#allocation6], 0
    %s11 = scalar_lea.sflag [#allocation6], 1
    %12 = vsyncpa %s11, 0
    %13 = vsyncpa [#allocation7], 0
    %s14 = scalar_lea.sflag [#allocation7], 1
    %15 = vsyncpa %s14, 0
    loop: start=0, step=1, limit=14
    $region2: #{_lora_linear_apply.1} parent=1 // loop_pre_header
      _
    $region3: #{_lora_linear_apply.1} parent=1 // loop_header
      %s17 = sphi 0, %s21
      %p18 = scmp.ge.s32.totalorder %s17, 14
      %s24 = sphi 0, %s43
      %s25 = sphi 0, %s39
      %s26 = sphi 0, %s35
      %s27 = sphi 0, %s24
      %s28 = sphi 0, %s25
      %s29 = sphi 0, %s26
      %s30 = sphi 0, %s27
      %s31 = sphi 0, %s28
      %s32 = sphi 0, %s29
      %s48 = sphi 0, %s50
      %s51 = sphi 0, %s48
      %s52 = sphi 0, %s51
      %s68 = sphi 0, %s52
      %s76 = sphi 0, %s78
      %s79 = sphi 0, %s76
      %s80 = sphi 0, %s79
      %s96 = sphi 0, %s80
      %s102 = sphi 0, %s104
      %s105 = sphi 0, %s102
      %s106 = sphi 0, %s105
      %s122 = sphi 0, %s106
      %s128 = sphi 0, %s130
      %s131 = sphi 0, %s128
      %s132 = sphi 0, %s131
      %s148 = sphi 0, %s132
      %s154 = sphi 0, %s156
      %s157 = sphi 0, %s154
      %s158 = sphi 0, %s157
      %s174 = sphi 0, %s158
      %s182 = sphi 0, %s184
      %s185 = sphi 0, %s182
      %s186 = sphi 0, %s185
      %s202 = sphi 0, %s186
    $region4: #{_lora_linear_apply.1} parent=1 // loop_header_branch
      %20 = sbr.rel (%p18) target = $region8
    $region5: #{_lora_linear_apply.1} parent=1 // loop_body
      %s22 = ssub.s32 %s17, 1
      %s23 = ssub.s32 %s17, 2
      %s33 = sadd.s32 1, %s26
      %p34 = scmp.ge.s32.totalorder %s33, 2
      %s35 = scalar_select %p34, 0, %s33
      %s36 = sadd.s32 1, %s25
      %s37 = scalar_select %p34, %s36, %s25
      %p38 = scmp.ge.s32.totalorder %s37, 2
      %s39 = scalar_select %p38, 0, %s37
      %s40 = sadd.s32 1, %s24
      %s41 = scalar_select %p38, %s40, %s24
      %p42 = scmp.ge.s32.totalorder %s41, 3
      %s43 = scalar_select %p42, 0, %s41
      %s44 = ssub.s32 %s24, %s43
      %s45 = ssub.s32 %s26, %s35
      %s46 = sor.u32 %s44, %s45
      %p47 = scmp.eq.s32.totalorder %s46, 0
      %s49 = sadd.s32 %s48, 1
      %s50 = scalar_select %p47, %s48, %s49
      %p53 = pneg %p47
      %p54 = scmp.eq.s32.totalorder %s17, 11
      %p55 = por %p53, %p54
      %p56 = scmp.ne.s32.totalorder %s48, %s51
      %p57 = scmp.eq.s32.totalorder %s17, 0
      %p58 = por %p56, %p57
      %p59 = scmp.ne.s32.totalorder %s48, %s51
      %p60 = scmp.eq.s32.totalorder %s22, 11
      %p61 = por %p59, %p60
      %p62 = scmp.ne.s32.totalorder %s51, %s52
      %p63 = scmp.eq.s32.totalorder %s22, 0
      %p64 = por %p62, %p63
      %p65 = scmp.ne.s32.totalorder %s51, %s52
      %p66 = scmp.eq.s32.totalorder %s23, 11
      %p67 = por %p65, %p66
      %p69 = scmp.ne.s32.totalorder %s52, %s68
      %p70 = scmp.eq.s32.totalorder %s23, 0
      %p71 = por %p69, %p70
      %s72 = ssub.s32 %s26, %s35
      %s73 = ssub.s32 %s25, %s39
      %s74 = sor.u32 %s72, %s73
      %p75 = scmp.eq.s32.totalorder %s74, 0
      %s77 = sadd.s32 %s76, 1
      %s78 = scalar_select %p75, %s76, %s77
      %p81 = pneg %p75
      %p82 = scmp.eq.s32.totalorder %s17, 11
      %p83 = por %p81, %p82
      %p84 = scmp.ne.s32.totalorder %s76, %s79
      %p85 = scmp.eq.s32.totalorder %s17, 0
      %p86 = por %p84, %p85
      %p87 = scmp.ne.s32.totalorder %s76, %s79
      %p88 = scmp.eq.s32.totalorder %s22, 11
      %p89 = por %p87, %p88
      %p90 = scmp.ne.s32.totalorder %s79, %s80
      %p91 = scmp.eq.s32.totalorder %s22, 0
      %p92 = por %p90, %p91
      %p93 = scmp.ne.s32.totalorder %s79, %s80
      %p94 = scmp.eq.s32.totalorder %s23, 11
      %p95 = por %p93, %p94
      %p97 = scmp.ne.s32.totalorder %s80, %s96
      %p98 = scmp.eq.s32.totalorder %s23, 0
      %p99 = por %p97, %p98
      %s100 = ssub.s32 %s25, %s39
      %p101 = scmp.eq.s32.totalorder %s100, 0
      %s103 = sadd.s32 %s102, 1
      %s104 = scalar_select %p101, %s102, %s103
      %p107 = pneg %p101
      %p108 = scmp.eq.s32.totalorder %s17, 11
      %p109 = por %p107, %p108
      %p110 = scmp.ne.s32.totalorder %s102, %s105
      %p111 = scmp.eq.s32.totalorder %s17, 0
      %p112 = por %p110, %p111
      %p113 = scmp.ne.s32.totalorder %s102, %s105
      %p114 = scmp.eq.s32.totalorder %s22, 11
      %p115 = por %p113, %p114
      %p116 = scmp.ne.s32.totalorder %s105, %s106
      %p117 = scmp.eq.s32.totalorder %s22, 0
      %p118 = por %p116, %p117
      %p119 = scmp.ne.s32.totalorder %s105, %s106
      %p120 = scmp.eq.s32.totalorder %s23, 11
      %p121 = por %p119, %p120
      %p123 = scmp.ne.s32.totalorder %s106, %s122
      %p124 = scmp.eq.s32.totalorder %s23, 0
      %p125 = por %p123, %p124
      %s126 = ssub.s32 %s24, %s43
      %p127 = scmp.eq.s32.totalorder %s126, 0
      %s129 = sadd.s32 %s128, 1
      %s130 = scalar_select %p127, %s128, %s129
      %p133 = pneg %p127
      %p134 = scmp.eq.s32.totalorder %s17, 11
      %p135 = por %p133, %p134
      %p136 = scmp.ne.s32.totalorder %s128, %s131
      %p137 = scmp.eq.s32.totalorder %s17, 0
      %p138 = por %p136, %p137
      %p139 = scmp.ne.s32.totalorder %s128, %s131
      %p140 = scmp.eq.s32.totalorder %s22, 11
      %p141 = por %p139, %p140
      %p142 = scmp.ne.s32.totalorder %s131, %s132
      %p143 = scmp.eq.s32.totalorder %s22, 0
      %p144 = por %p142, %p143
      %p145 = scmp.ne.s32.totalorder %s131, %s132
      %p146 = scmp.eq.s32.totalorder %s23, 11
      %p147 = por %p145, %p146
      %p149 = scmp.ne.s32.totalorder %s132, %s148
      %p150 = scmp.eq.s32.totalorder %s23, 0
      %p151 = por %p149, %p150
      %s152 = ssub.s32 %s25, %s39
      %p153 = scmp.eq.s32.totalorder %s152, 0
      %s155 = sadd.s32 %s154, 1
      %s156 = scalar_select %p153, %s154, %s155
      %p159 = pneg %p153
      %p160 = scmp.eq.s32.totalorder %s17, 11
      %p161 = por %p159, %p160
      %p162 = scmp.ne.s32.totalorder %s154, %s157
      %p163 = scmp.eq.s32.totalorder %s17, 0
      %p164 = por %p162, %p163
      %p165 = scmp.ne.s32.totalorder %s154, %s157
      %p166 = scmp.eq.s32.totalorder %s22, 11
      %p167 = por %p165, %p166
      %p168 = scmp.ne.s32.totalorder %s157, %s158
      %p169 = scmp.eq.s32.totalorder %s22, 0
      %p170 = por %p168, %p169
      %p171 = scmp.ne.s32.totalorder %s157, %s158
      %p172 = scmp.eq.s32.totalorder %s23, 11
      %p173 = por %p171, %p172
      %p175 = scmp.ne.s32.totalorder %s158, %s174
      %p176 = scmp.eq.s32.totalorder %s23, 0
      %p177 = por %p175, %p176
      %s178 = ssub.s32 %s24, %s43
      %s179 = ssub.s32 %s25, %s39
      %s180 = sor.u32 %s178, %s179
      %p181 = scmp.eq.s32.totalorder %s180, 0
      %s183 = sadd.s32 %s182, 1
      %s184 = scalar_select %p181, %s182, %s183
      %p187 = pneg %p181
      %p188 = scmp.eq.s32.totalorder %s17, 11
      %p189 = por %p187, %p188
      %p190 = scmp.ne.s32.totalorder %s182, %s185
      %p191 = scmp.eq.s32.totalorder %s17, 0
      %p192 = por %p190, %p191
      %p193 = scmp.ne.s32.totalorder %s182, %s185
      %p194 = scmp.eq.s32.totalorder %s22, 11
      %p195 = por %p193, %p194
      %p196 = scmp.ne.s32.totalorder %s185, %s186
      %p197 = scmp.eq.s32.totalorder %s22, 0
      %p198 = por %p196, %p197
      %p199 = scmp.ne.s32.totalorder %s185, %s186
      %p200 = scmp.eq.s32.totalorder %s23, 11
      %p201 = por %p199, %p200
      %p203 = scmp.ne.s32.totalorder %s186, %s202
      %p204 = scmp.eq.s32.totalorder %s23, 0
      %p205 = por %p203, %p204
      %p206 = scmp.le.s32.totalorder 1, %s17
      %p207 = scmp.lt.s32.totalorder %s17, 13
      %p208 = pnand %p206, %p207
      %p209 = pneg %p208
      // Predicated region
      $region9: #{_lora_linear_apply.1} parent=5 // pred_check
        _
      $region10: #{_lora_linear_apply.1} parent=5 // pred_check_branch
        %211 = sbr.rel (%p208) target = $region12
      $region11: #{_lora_linear_apply.1} parent=5 // pred_region
        %s212 = ssub.s32 %s17, 1
      $region12: #{_lora_linear_apply.1} parent=5 // pred_fallthru
        _
      %p213 = scmp.lt.s32.totalorder %s17, 12
      // Predicated region
      $region13: #{_lora_linear_apply.1} parent=5 // pred_check
        %p214 = pneg %p213
      $region14: #{_lora_linear_apply.1} parent=5 // pred_check_branch
        %216 = sbr.rel (%p214) target = $region16
      $region15: #{_lora_linear_apply.1} parent=5 // pred_region
        // Predicated region
        $region17: #{_lora_linear_apply.1} parent=15 // pred_check
          %p217 = pneg %p58
        $region18: #{_lora_linear_apply.1} parent=15 // pred_check_branch
          %219 = sbr.rel (%p217) target = $region20
        $region19: #{_lora_linear_apply.1} parent=15 // pred_region
          %s220 = sand.u32 %s48, 1
          %s221 = sand.u32 %s48, 1
          %s222 = smul.addr %s221, 16
          %s223 = scalar_lea.vmem [#allocation3], %s222
          %s224 = smul.u32 2, %s24
          %s225 = smul.addr %s224, 2
          %s226 = sadd.s32 %s26, %s225
          %s227 = smul.addr %s226, 8
          %s228 = scalar_lea.vmem %s0, %s227
          // Predicated region
          $region21: #{_lora_linear_apply.1} parent=19 // pred_check
            _
          $region22: #{_lora_linear_apply.1} parent=19 // pred_check_branch
            %230 = sbr.rel (0) target = $region24
          $region23: #{_lora_linear_apply.1} parent=19 // pred_region
            // Predicated region
            $region25: #{_lora_linear_apply.1} parent=23 // pred_check
              _
            $region26: #{_lora_linear_apply.1} parent=23 // pred_check_branch
              %232 = sbr.rel (0) target = $region28
            $region27: #{_lora_linear_apply.1} parent=23 // pred_region
              // Predicated region
              $region40: #{_lora_linear_apply.1} parent=27 // pred_check
                _
              $region41: #{_lora_linear_apply.1} parent=27 // pred_check_branch
                %249 = sbr.rel (0) target = $region43
              $region42: #{_lora_linear_apply.1} parent=27 // pred_region
                loop: start=0, step=1, limit=1
                $region44: #{_lora_linear_apply.1} parent=42 // loop_pre_header
                  _
                $region45: #{_lora_linear_apply.1} parent=42 // loop_header
                  %s251 = sphi 0, %s255
                  %p252 = scmp.ge.s32.totalorder %s251, 1
                  %s256 = sphi %s228, %s228
                  %s257 = sphi %s223, %s223
                $region46: #{_lora_linear_apply.1} parent=42 // loop_header_branch
                  %254 = sbr.rel (%p252) target = $region50
                $region47: #{_lora_linear_apply.1} parent=42 // loop_body
                  %v258 = vld [vmem:[%s256] sm:$0xff]
                  %259 = vst [vmem:[%s257] sm:$0xff] %v258
                  %v260 = vld [vmem:[%s256 + $0x10] sm:$0xff]
                  %261 = vst [vmem:[%s257 + $0x8] sm:$0xff] %v260
                $region48: #{_lora_linear_apply.1} parent=42 // loop_footer
                  %s255 = sadd.s32 1, %s251
                $region49: #{_lora_linear_apply.1} parent=42 // loop_footer_branch
                  %250 = sbr.rel target = $region45
                $region50: #{_lora_linear_apply.1} parent=42 // loop_exit
                  _
              $region43: #{_lora_linear_apply.1} parent=27 // pred_fallthru
                _
              // Predicated region
              $region51: #{_lora_linear_apply.1} parent=27 // pred_check
                _
              $region52: #{_lora_linear_apply.1} parent=27 // pred_check_branch
                %263 = sbr.rel target = $region54
              $region53: #{_lora_linear_apply.1} parent=27 // pred_region
                _
              $region54: #{_lora_linear_apply.1} parent=27 // pred_fallthru
                _
            $region28: #{_lora_linear_apply.1} parent=23 // pred_fallthru
              _
            // Predicated region
            $region29: #{_lora_linear_apply.1} parent=23 // pred_check
              _
            $region30: #{_lora_linear_apply.1} parent=23 // pred_check_branch
              %234 = sbr.rel target = $region32
            $region31: #{_lora_linear_apply.1} parent=23 // pred_region
              loop: start=0, step=1, limit=1
              $region33: #{_lora_linear_apply.1} parent=31 // loop_pre_header
                _
              $region34: #{_lora_linear_apply.1} parent=31 // loop_header
                %s237 = sphi 0, %s241
                %p238 = scmp.ge.s32.totalorder %s237, 1
                %s242 = sphi %s228, %s228
                %s243 = sphi %s223, %s223
              $region35: #{_lora_linear_apply.1} parent=31 // loop_header_branch
                %240 = sbr.rel (%p238) target = $region39
              $region36: #{_lora_linear_apply.1} parent=31 // loop_body
                %v244 = vld [vmem:[%s242] sm:$0xff]
                %245 = vst [vmem:[%s243] sm:$0xff] %v244
                %v246 = vld [vmem:[%s242 + $0x10] sm:$0xff]
                %247 = vst [vmem:[%s243 + $0x8] sm:$0xff] %v246
              $region37: #{_lora_linear_apply.1} parent=31 // loop_footer
                %s241 = sadd.s32 1, %s237
              $region38: #{_lora_linear_apply.1} parent=31 // loop_footer_branch
                %236 = sbr.rel target = $region34
              $region39: #{_lora_linear_apply.1} parent=31 // loop_exit
                _
            $region32: #{_lora_linear_apply.1} parent=23 // pred_fallthru
              _
          $region24: #{_lora_linear_apply.1} parent=19 // pred_fallthru
            _
          %264 = vnop
        $region20: #{_lora_linear_apply.1} parent=15 // pred_fallthru
          _
        // Predicated region
        $region55: #{_lora_linear_apply.1} parent=15 // pred_check
          %p265 = pneg %p86
        $region56: #{_lora_linear_apply.1} parent=15 // pred_check_branch
          %267 = sbr.rel (%p265) target = $region58
        $region57: #{_lora_linear_apply.1} parent=15 // pred_region
          %s268 = sand.u32 %s76, 1
          %s269 = sand.u32 %s76, 1
          %s270 = smul.addr %s269, 128
          %s271 = scalar_lea.vmem [#allocation4], %s270
          %s272 = smul.u32 16, %s26
          %s273 = smul.addr %s272, 2
          %s274 = sadd.s32 %s25, %s273
          %s275 = smul.addr %s274, 8
          %s276 = scalar_lea.vmem %s1, %s275
          // Predicated region
          $region59: #{_lora_linear_apply.1} parent=57 // pred_check
            _
          $region60: #{_lora_linear_apply.1} parent=57 // pred_check_branch
            %278 = sbr.rel (0) target = $region62
          $region61: #{_lora_linear_apply.1} parent=57 // pred_region
            // Predicated region
            $region63: #{_lora_linear_apply.1} parent=61 // pred_check
              _
            $region64: #{_lora_linear_apply.1} parent=61 // pred_check_branch
              %280 = sbr.rel (0) target = $region66
            $region65: #{_lora_linear_apply.1} parent=61 // pred_region
              // Predicated region
              $region78: #{_lora_linear_apply.1} parent=65 // pred_check
                _
              $region79: #{_lora_linear_apply.1} parent=65 // pred_check_branch
                %325 = sbr.rel (0) target = $region81
              $region80: #{_lora_linear_apply.1} parent=65 // pred_region
                loop: start=0, step=1, limit=1
                $region82: #{_lora_linear_apply.1} parent=80 // loop_pre_header
                  _
                $region83: #{_lora_linear_apply.1} parent=80 // loop_header
                  %s327 = sphi 0, %s331
                  %p328 = scmp.ge.s32.totalorder %s327, 1
                  %s332 = sphi %s276, %s276
                  %s333 = sphi %s271, %s271
                $region84: #{_lora_linear_apply.1} parent=80 // loop_header_branch
                  %330 = sbr.rel (%p328) target = $region88
                $region85: #{_lora_linear_apply.1} parent=80 // loop_body
                  %v334 = vld [vmem:[%s332] sm:$0xff]
                  %335 = vst [vmem:[%s333] sm:$0xff] %v334
                  %v336 = vld [vmem:[%s332 + $0x10] sm:$0xff]
                  %337 = vst [vmem:[%s333 + $0x8] sm:$0xff] %v336
                  %v338 = vld [vmem:[%s332 + $0x20] sm:$0xff]
                  %339 = vst [vmem:[%s333 + $0x10] sm:$0xff] %v338
                  %v340 = vld [vmem:[%s332 + $0x30] sm:$0xff]
                  %341 = vst [vmem:[%s333 + $0x18] sm:$0xff] %v340
                  %v342 = vld [vmem:[%s332 + $0x40] sm:$0xff]
                  %343 = vst [vmem:[%s333 + $0x20] sm:$0xff] %v342
                  %v344 = vld [vmem:[%s332 + $0x50] sm:$0xff]
                  %345 = vst [vmem:[%s333 + $0x28] sm:$0xff] %v344
                  %v346 = vld [vmem:[%s332 + $0x60] sm:$0xff]
                  %347 = vst [vmem:[%s333 + $0x30] sm:$0xff] %v346
                  %v348 = vld [vmem:[%s332 + $0x70] sm:$0xff]
                  %349 = vst [vmem:[%s333 + $0x38] sm:$0xff] %v348
                  %v350 = vld [vmem:[%s332 + $0x80] sm:$0xff]
                  %351 = vst [vmem:[%s333 + $0x40] sm:$0xff] %v350
                  %v352 = vld [vmem:[%s332 + $0x90] sm:$0xff]
                  %353 = vst [vmem:[%s333 + $0x48] sm:$0xff] %v352
                  %v354 = vld [vmem:[%s332 + $0xa0] sm:$0xff]
                  %355 = vst [vmem:[%s333 + $0x50] sm:$0xff] %v354
                  %v356 = vld [vmem:[%s332 + $0xb0] sm:$0xff]
                  %357 = vst [vmem:[%s333 + $0x58] sm:$0xff] %v356
                  %v358 = vld [vmem:[%s332 + $0xc0] sm:$0xff]
                  %359 = vst [vmem:[%s333 + $0x60] sm:$0xff] %v358
                  %v360 = vld [vmem:[%s332 + $0xd0] sm:$0xff]
                  %361 = vst [vmem:[%s333 + $0x68] sm:$0xff] %v360
                  %v362 = vld [vmem:[%s332 + $0xe0] sm:$0xff]
                  %363 = vst [vmem:[%s333 + $0x70] sm:$0xff] %v362
                  %v364 = vld [vmem:[%s332 + $0xf0] sm:$0xff]
                  %365 = vst [vmem:[%s333 + $0x78] sm:$0xff] %v364
                $region86: #{_lora_linear_apply.1} parent=80 // loop_footer
                  %s331 = sadd.s32 1, %s327
                $region87: #{_lora_linear_apply.1} parent=80 // loop_footer_branch
                  %326 = sbr.rel target = $region83
                $region88: #{_lora_linear_apply.1} parent=80 // loop_exit
                  _
              $region81: #{_lora_linear_apply.1} parent=65 // pred_fallthru
                _
              // Predicated region
              $region89: #{_lora_linear_apply.1} parent=65 // pred_check
                _
              $region90: #{_lora_linear_apply.1} parent=65 // pred_check_branch
                %367 = sbr.rel target = $region92
              $region91: #{_lora_linear_apply.1} parent=65 // pred_region
                _
              $region92: #{_lora_linear_apply.1} parent=65 // pred_fallthru
                _
            $region66: #{_lora_linear_apply.1} parent=61 // pred_fallthru
              _
            // Predicated region
            $region67: #{_lora_linear_apply.1} parent=61 // pred_check
              _
            $region68: #{_lora_linear_apply.1} parent=61 // pred_check_branch
              %282 = sbr.rel target = $region70
            $region69: #{_lora_linear_apply.1} parent=61 // pred_region
              loop: start=0, step=1, limit=1
              $region71: #{_lora_linear_apply.1} parent=69 // loop_pre_header
                _
              $region72: #{_lora_linear_apply.1} parent=69 // loop_header
                %s285 = sphi 0, %s289
                %p286 = scmp.ge.s32.totalorder %s285, 1
                %s290 = sphi %s276, %s276
                %s291 = sphi %s271, %s271
              $region73: #{_lora_linear_apply.1} parent=69 // loop_header_branch
                %288 = sbr.rel (%p286) target = $region77
              $region74: #{_lora_linear_apply.1} parent=69 // loop_body
                %v292 = vld [vmem:[%s290] sm:$0xff]
                %293 = vst [vmem:[%s291] sm:$0xff] %v292
                %v294 = vld [vmem:[%s290 + $0x10] sm:$0xff]
                %295 = vst [vmem:[%s291 + $0x8] sm:$0xff] %v294
                %v296 = vld [vmem:[%s290 + $0x20] sm:$0xff]
                %297 = vst [vmem:[%s291 + $0x10] sm:$0xff] %v296
                %v298 = vld [vmem:[%s290 + $0x30] sm:$0xff]
                %299 = vst [vmem:[%s291 + $0x18] sm:$0xff] %v298
                %v300 = vld [vmem:[%s290 + $0x40] sm:$0xff]
                %301 = vst [vmem:[%s291 + $0x20] sm:$0xff] %v300
                %v302 = vld [vmem:[%s290 + $0x50] sm:$0xff]
                %303 = vst [vmem:[%s291 + $0x28] sm:$0xff] %v302
                %v304 = vld [vmem:[%s290 + $0x60] sm:$0xff]
                %305 = vst [vmem:[%s291 + $0x30] sm:$0xff] %v304
                %v306 = vld [vmem:[%s290 + $0x70] sm:$0xff]
                %307 = vst [vmem:[%s291 + $0x38] sm:$0xff] %v306
                %v308 = vld [vmem:[%s290 + $0x80] sm:$0xff]
                %309 = vst [vmem:[%s291 + $0x40] sm:$0xff] %v308
                %v310 = vld [vmem:[%s290 + $0x90] sm:$0xff]
                %311 = vst [vmem:[%s291 + $0x48] sm:$0xff] %v310
                %v312 = vld [vmem:[%s290 + $0xa0] sm:$0xff]
                %313 = vst [vmem:[%s291 + $0x50] sm:$0xff] %v312
                %v314 = vld [vmem:[%s290 + $0xb0] sm:$0xff]
                %315 = vst [vmem:[%s291 + $0x58] sm:$0xff] %v314
                %v316 = vld [vmem:[%s290 + $0xc0] sm:$0xff]
                %317 = vst [vmem:[%s291 + $0x60] sm:$0xff] %v316
                %v318 = vld [vmem:[%s290 + $0xd0] sm:$0xff]
                %319 = vst [vmem:[%s291 + $0x68] sm:$0xff] %v318
                %v320 = vld [vmem:[%s290 + $0xe0] sm:$0xff]
                %321 = vst [vmem:[%s291 + $0x70] sm:$0xff] %v320
                %v322 = vld [vmem:[%s290 + $0xf0] sm:$0xff]
                %323 = vst [vmem:[%s291 + $0x78] sm:$0xff] %v322
              $region75: #{_lora_linear_apply.1} parent=69 // loop_footer
                %s289 = sadd.s32 1, %s285
              $region76: #{_lora_linear_apply.1} parent=69 // loop_footer_branch
                %284 = sbr.rel target = $region72
              $region77: #{_lora_linear_apply.1} parent=69 // loop_exit
                _
            $region70: #{_lora_linear_apply.1} parent=61 // pred_fallthru
              _
          $region62: #{_lora_linear_apply.1} parent=57 // pred_fallthru
            _
          %368 = vnop
        $region58: #{_lora_linear_apply.1} parent=15 // pred_fallthru
          _
        // Predicated region
        $region93: #{_lora_linear_apply.1} parent=15 // pred_check
          %p369 = pneg %p112
        $region94: #{_lora_linear_apply.1} parent=15 // pred_check_branch
          %371 = sbr.rel (%p369) target = $region96
        $region95: #{_lora_linear_apply.1} parent=15 // pred_region
          %p372 = scmp.lt.s32.totalorder %s25, 1
          %s373 = scalar_select %p372, %s25, 1
          %s374 = scalar_lea.vmem %s2, %s373
        $region96: #{_lora_linear_apply.1} parent=15 // pred_fallthru
          _
        // Predicated region
        $region97: #{_lora_linear_apply.1} parent=15 // pred_check
          %p375 = pneg %p138
        $region98: #{_lora_linear_apply.1} parent=15 // pred_check_branch
          %377 = sbr.rel (%p375) target = $region100
        $region99: #{_lora_linear_apply.1} parent=15 // pred_region
          %s378 = smul.u32 2, %s24
          %p379 = scmp.lt.s32.totalorder %s378, 5
          %s380 = scalar_select %p379, %s378, 5
          %s381 = smul.addr %s380, 8
          %s382 = scalar_lea.vmem %s3, %s381
          %s383 = smul.u32 2, %s24
        $region100: #{_lora_linear_apply.1} parent=15 // pred_fallthru
          _
        // Predicated region
        $region101: #{_lora_linear_apply.1} parent=15 // pred_check
          %p384 = pneg %p164
        $region102: #{_lora_linear_apply.1} parent=15 // pred_check_branch
          %386 = sbr.rel (%p384) target = $region104
        $region103: #{_lora_linear_apply.1} parent=15 // pred_region
          %s387 = sand.u32 %s154, 1
          %s388 = scalar_lea.sflag [#allocation6], %s387
          %s389 = sand.u32 %s154, 1
          %s390 = smul.addr %s389, 128
          %s391 = scalar_lea.vmem [#allocation5], %s390
          %s393 = ssub.s32 2048, 2048
          %394 = vsyncadd %s388, %s393
          %s395 = smul.addr %s25, 128
          %s396 = scalar_lea.hbm %s4, %s395
          %s397 = sshll.u32 %s391, 4
          %s398 = int_to_ptr.vmem [resolvable:$true] %s397
          %403 = dma.hbm_to_vmem [thread:$0]  %s396, 2048, %s398, %s388, 256, 128, 8
        $region104: #{_lora_linear_apply.1} parent=15 // pred_fallthru
          _
      $region16: #{_lora_linear_apply.1} parent=5 // pred_fallthru
        _
      %p404 = scmp.le.s32.totalorder 1, %s17
      %p405 = scmp.lt.s32.totalorder %s17, 13
      %p406 = pnand %p404, %p405
      %p407 = pneg %p406
      // Predicated region
      $region105: #{_lora_linear_apply.1} parent=5 // pred_check
        _
      $region106: #{_lora_linear_apply.1} parent=5 // pred_check_branch
        %409 = sbr.rel (%p406) target = $region108
      $region107: #{_lora_linear_apply.1} parent=5 // pred_region
        %s410 = ssub.s32 %s17, 1
        %s411 = sand.u32 %s51, 1
        %s412 = sand.u32 %s51, 1
        %s413 = smul.addr %s412, 16
        %s414 = scalar_lea.vmem [#allocation3], %s413
        // Predicated region
        $region109: #{_lora_linear_apply.1} parent=107 // pred_check
          %p415 = pneg %p64
        $region110: #{_lora_linear_apply.1} parent=107 // pred_check_branch
          %417 = sbr.rel (%p415) target = $region112
        $region111: #{_lora_linear_apply.1} parent=107 // pred_region
          _
        $region112: #{_lora_linear_apply.1} parent=107 // pred_fallthru
          _
        %s418 = sand.u32 %s79, 1
        %s419 = sand.u32 %s79, 1
        %s420 = smul.addr %s419, 128
        %s421 = scalar_lea.vmem [#allocation4], %s420
        // Predicated region
        $region113: #{_lora_linear_apply.1} parent=107 // pred_check
          %p422 = pneg %p92
        $region114: #{_lora_linear_apply.1} parent=107 // pred_check_branch
          %424 = sbr.rel (%p422) target = $region116
        $region115: #{_lora_linear_apply.1} parent=107 // pred_region
          _
        $region116: #{_lora_linear_apply.1} parent=107 // pred_fallthru
          _
        %s425 = sand.u32 %s157, 1
        %s426 = scalar_lea.sflag [#allocation6], %s425
        %s427 = sand.u32 %s157, 1
        %s428 = smul.addr %s427, 128
        %s429 = scalar_lea.vmem [#allocation5], %s428
        // Predicated region
        $region117: #{_lora_linear_apply.1} parent=107 // pred_check
          %p430 = pneg %p170
        $region118: #{_lora_linear_apply.1} parent=107 // pred_check_branch
          %432 = sbr.rel (%p430) target = $region120
        $region119: #{_lora_linear_apply.1} parent=107 // pred_region
          %433 = dma.done %s426, 2048
        $region120: #{_lora_linear_apply.1} parent=107 // pred_fallthru
          _
        %s434 = sand.u32 %s51, 1
        %s435 = sand.u32 %s51, 1
        %s436 = smul.addr %s435, 16
        %s437 = scalar_lea.vmem [#allocation3], %s436
        %p438 = pneg %p64
        %p439 = pneg %p61
        %s440 = sand.u32 %s79, 1
        %s441 = sand.u32 %s79, 1
        %s442 = smul.addr %s441, 128
        %s443 = scalar_lea.vmem [#allocation4], %s442
        %p444 = pneg %p92
        %p445 = pneg %p89
        %p446 = scmp.lt.s32.totalorder %s28, 1
        %s447 = scalar_select %p446, %s28, 1
        %s448 = scalar_lea.vmem %s2, %s447
        %p449 = pneg %p118
        %p450 = pneg %p115
        %s451 = smul.u32 2, %s27
        %p452 = scmp.lt.s32.totalorder %s451, 5
        %s453 = scalar_select %p452, %s451, 5
        %s454 = smul.addr %s453, 8
        %s455 = scalar_lea.vmem %s3, %s454
        %p456 = pneg %p144
        %p457 = pneg %p141
        %s458 = sand.u32 %s157, 1
        %s459 = scalar_lea.sflag [#allocation6], %s458
        %s460 = sand.u32 %s157, 1
        %s461 = smul.addr %s460, 128
        %s462 = scalar_lea.vmem [#allocation5], %s461
        %p463 = pneg %p170
        %p464 = pneg %p167
        %p465 = pneg %p198
        %p466 = pneg %p195
        %s467 = sand.u32 %s185, 1
        %s468 = scalar_lea.sflag [#allocation7], %s467
        %s469 = sand.u32 %s185, 1
        %s470 = smul.addr %s469, 16
        %s471 = scalar_lea.vmem [#allocation8], %s470
        %s472 = smul.u32 2, %s27
        %s473 = smul.u32 16, %s29
        %p474 = scmp.lt.s32.totalorder %s28, 1
        %s475 = scalar_select %p474, %s28, 1
        %s476 = scalar_lea.vmem %s2, %s475
        %s477 = smul.u32 2, %s27
        %p478 = scmp.lt.s32.totalorder %s477, 5
        %s479 = scalar_select %p478, %s477, 5
        %s480 = smul.addr %s479, 8
        %s481 = scalar_lea.vmem %s3, %s480
        %s482 = smul.u32 2, %s27
        %s483 = smul.u32 2, %s27
        %p484 = scmp.eq.s32.totalorder %s29, 0
        // Predicated region
        $region121: #{_lora_linear_apply.1} parent=107 // pred_check
          %p485 = pneg %p484
        $region122: #{_lora_linear_apply.1} parent=107 // pred_check_branch
          %487 = sbr.rel (%p485) target = $region124
        $region123: #{_lora_linear_apply.1} parent=107 // pred_region
          %488 = vst [vmem:[#allocation2] sm:$0xff] 0.0
          %489 = vst [vmem:[#allocation2 + $0x8] sm:$0xff] 0.0
        $region124: #{_lora_linear_apply.1} parent=107 // pred_fallthru
          _
        %v490 = vld [vmem:[#allocation2] sm:$0xff]
        %v491 = vld [vmem:[#allocation2 + $0x8] sm:$0xff]
        %v492 = vld [vmem:[%s414] sm:$0xff]
        %v493 = vld [vmem:[%s414 + $0x8] sm:$0xff]
        %v494 = vld [vmem:[%s421] sm:$0xff]
        %v495 = vld [vmem:[%s421 + $0x8] sm:$0xff]
        %v496 = vld [vmem:[%s421 + $0x10] sm:$0xff]
        %v497 = vld [vmem:[%s421 + $0x18] sm:$0xff]
        %v498 = vld [vmem:[%s421 + $0x20] sm:$0xff]
        %v499 = vld [vmem:[%s421 + $0x28] sm:$0xff]
        %v500 = vld [vmem:[%s421 + $0x30] sm:$0xff]
        %v501 = vld [vmem:[%s421 + $0x38] sm:$0xff]
        %v502 = vld [vmem:[%s421 + $0x40] sm:$0xff]
        %v503 = vld [vmem:[%s421 + $0x48] sm:$0xff]
        %v504 = vld [vmem:[%s421 + $0x50] sm:$0xff]
        %v505 = vld [vmem:[%s421 + $0x58] sm:$0xff]
        %v506 = vld [vmem:[%s421 + $0x60] sm:$0xff]
        %v507 = vld [vmem:[%s421 + $0x68] sm:$0xff]
        %v508 = vld [vmem:[%s421 + $0x70] sm:$0xff]
        %v509 = vld [vmem:[%s421 + $0x78] sm:$0xff]
        %510 = vmatprep.subr.mxu0 0.0
        %511 = vmatpush1.msra.mxu0 %v494
        %512 = vmatprep.subr.mxu0 0.0
        %513 = vmatpush1.msra.mxu0 %v495
        %514 = vmatprep.subr.mxu0 0.0
        %515 = vmatpush1.msra.mxu0 %v496
        %516 = vmatprep.subr.mxu0 0.0
        %517 = vmatpush1.msra.mxu0 %v497
        %518 = vmatprep.subr.mxu0 0.0
        %519 = vmatpush1.msra.mxu0 %v498
        %520 = vmatprep.subr.mxu0 0.0
        %521 = vmatpush1.msra.mxu0 %v499
        %522 = vmatprep.subr.mxu0 0.0
        %523 = vmatpush1.msra.mxu0 %v500
        %524 = vmatprep.subr.mxu0 0.0
        %525 = vmatpush1.msra.mxu0 %v501
        %526 = vmatprep.subr.mxu0 0.0
        %527 = vmatpush1.msra.mxu0 %v502
        %528 = vmatprep.subr.mxu0 0.0
        %529 = vmatpush1.msra.mxu0 %v503
        %530 = vmatprep.subr.mxu0 0.0
        %531 = vmatpush1.msra.mxu0 %v504
        %532 = vmatprep.subr.mxu0 0.0
        %533 = vmatpush1.msra.mxu0 %v505
        %534 = vmatprep.subr.mxu0 0.0
        %535 = vmatpush1.msra.mxu0 %v506
        %536 = vmatprep.subr.mxu0 0.0
        %537 = vmatpush1.msra.mxu0 %v507
        %538 = vmatprep.subr.mxu0 0.0
        %539 = vmatpush1.msra.mxu0 %v508
        %540 = vmatprep.subr.mxu0 0.0
        %541 = vmatpush1.msra.mxu0 %v509
        %542 = vmatprep.subr.mxu0 0.0
        %543 = vmatpush1.msra.mxu0 0.0
        %544 = vmatprep.subr.mxu0 0.0
        %545 = vmatpush1.msra.mxu0 0.0
        %546 = vmatprep.subr.mxu0 0.0
        %547 = vmatpush1.msra.mxu0 0.0
        %548 = vmatprep.subr.mxu0 0.0
        %549 = vmatpush1.msra.mxu0 0.0
        %550 = vmatprep.subr.mxu0 0.0
        %551 = vmatpush1.msra.mxu0 0.0
        %552 = vmatprep.subr.mxu0 0.0
        %553 = vmatpush1.msra.mxu0 0.0
        %554 = vmatprep.subr.mxu0 0.0
        %555 = vmatpush1.msra.mxu0 0.0
        %556 = vmatprep.subr.mxu0 0.0
        %557 = vmatpush1.msra.mxu0 0.0
        %558 = vmatprep.subr.mxu0 0.0
        %559 = vmatpush1.msra.mxu0 0.0
        %560 = vmatprep.subr.mxu0 0.0
        %561 = vmatpush1.msra.mxu0 0.0
        %562 = vmatprep.subr.mxu0 0.0
        %563 = vmatpush1.msra.mxu0 0.0
        %564 = vmatprep.subr.mxu0 0.0
        %565 = vmatpush1.msra.mxu0 0.0
        %566 = vmatprep.subr.mxu0 0.0
        %567 = vmatpush1.msra.mxu0 0.0
        %568 = vmatprep.subr.mxu0 0.0
        %569 = vmatpush1.msra.mxu0 0.0
        %570 = vmatprep.subr.mxu0 0.0
        %571 = vmatpush1.msra.mxu0 0.0
        %572 = vmatprep.subr.mxu0 0.0
        %573 = vmatpush1.msra.mxu0 0.0
        %574 = vmatprep.mubr.f32.mxu0 0.0
        %575 = vmatmul.mubr.f32.gmra.mrb[0].mxu0 %v492
        %v576 = vpop.f32.mrb[0].mxu0
        %v577 = vadd.f32 0.0, %v576
        %v578 = vpop.f32.mrb[0].mxu0
        %579 = vmatprep.mubr.f32.mxu0 0.0
        %580 = vmatmul.mubr.f32.gmra.mrb[0].mxu0 %v493
        %v581 = vpop.f32.mrb[0].mxu0
        %v582 = vadd.f32 0.0, %v581
        %v583 = vpop.f32.mrb[0].mxu0
        %584 = vdwg.mxu0
        %v585 = vadd.f32 %v490, %v577
        %v586 = vadd.f32 %v491, %v582
        %587 = vst [vmem:[#allocation2] sm:$0xff] %v585
        %588 = vst [vmem:[#allocation2 + $0x8] sm:$0xff] %v586
        %p589 = scmp.eq.s32.totalorder %s29, 1
        // Predicated region
        $region125: #{_lora_linear_apply.1} parent=107 // pred_check
          %p590 = pneg %p589
        $region126: #{_lora_linear_apply.1} parent=107 // pred_check_branch
          %592 = sbr.rel (%p590) target = $region128
        $region127: #{_lora_linear_apply.1} parent=107 // pred_region
          %v593 = vld [vmem:[%s481] sm:$0xff]
          %v594 = vld [vmem:[%s481 + $0x8] sm:$0xff]
          %v595 = vld [vmem:[%s429] sm:$0xff]
          %v596 = vld [vmem:[%s429 + $0x8] sm:$0xff]
          %v597 = vld [vmem:[%s429 + $0x10] sm:$0xff]
          %v598 = vld [vmem:[%s429 + $0x18] sm:$0xff]
          %v599 = vld [vmem:[%s429 + $0x20] sm:$0xff]
          %v600 = vld [vmem:[%s429 + $0x28] sm:$0xff]
          %v601 = vld [vmem:[%s429 + $0x30] sm:$0xff]
          %v602 = vld [vmem:[%s429 + $0x38] sm:$0xff]
          %v603 = vld [vmem:[%s429 + $0x40] sm:$0xff]
          %v604 = vld [vmem:[%s429 + $0x48] sm:$0xff]
          %v605 = vld [vmem:[%s429 + $0x50] sm:$0xff]
          %v606 = vld [vmem:[%s429 + $0x58] sm:$0xff]
          %v607 = vld [vmem:[%s429 + $0x60] sm:$0xff]
          %v608 = vld [vmem:[%s429 + $0x68] sm:$0xff]
          %v609 = vld [vmem:[%s429 + $0x70] sm:$0xff]
          %v610 = vld [vmem:[%s429 + $0x78] sm:$0xff]
          %611 = vmatprep.subr.mxu0 0.0
          %612 = vmatpush1.msra.mxu0 %v595
          %613 = vmatprep.subr.mxu0 0.0
          %614 = vmatpush1.msra.mxu0 %v596
          %615 = vmatprep.subr.mxu0 0.0
          %616 = vmatpush1.msra.mxu0 %v597
          %617 = vmatprep.subr.mxu0 0.0
          %618 = vmatpush1.msra.mxu0 %v598
          %619 = vmatprep.subr.mxu0 0.0
          %620 = vmatpush1.msra.mxu0 %v599
          %621 = vmatprep.subr.mxu0 0.0
          %622 = vmatpush1.msra.mxu0 %v600
          %623 = vmatprep.subr.mxu0 0.0
          %624 = vmatpush1.msra.mxu0 %v601
          %625 = vmatprep.subr.mxu0 0.0
          %626 = vmatpush1.msra.mxu0 %v602
          %627 = vmatprep.subr.mxu0 0.0
          %628 = vmatpush1.msra.mxu0 %v603
          %629 = vmatprep.subr.mxu0 0.0
          %630 = vmatpush1.msra.mxu0 %v604
          %631 = vmatprep.subr.mxu0 0.0
          %632 = vmatpush1.msra.mxu0 %v605
          %633 = vmatprep.subr.mxu0 0.0
          %634 = vmatpush1.msra.mxu0 %v606
          %635 = vmatprep.subr.mxu0 0.0
          %636 = vmatpush1.msra.mxu0 %v607
          %637 = vmatprep.subr.mxu0 0.0
          %638 = vmatpush1.msra.mxu0 %v608
          %639 = vmatprep.subr.mxu0 0.0
          %640 = vmatpush1.msra.mxu0 %v609
          %641 = vmatprep.subr.mxu0 0.0
          %642 = vmatpush1.msra.mxu0 %v610
          %643 = vmatprep.subr.mxu0 0.0
          %644 = vmatpush1.msra.mxu0 0.0
          %645 = vmatprep.subr.mxu0 0.0
          %646 = vmatpush1.msra.mxu0 0.0
          %647 = vmatprep.subr.mxu0 0.0
          %648 = vmatpush1.msra.mxu0 0.0
          %649 = vmatprep.subr.mxu0 0.0
          %650 = vmatpush1.msra.mxu0 0.0
          %651 = vmatprep.subr.mxu0 0.0
          %652 = vmatpush1.msra.mxu0 0.0
          %653 = vmatprep.subr.mxu0 0.0
          %654 = vmatpush1.msra.mxu0 0.0
          %655 = vmatprep.subr.mxu0 0.0
          %656 = vmatpush1.msra.mxu0 0.0
          %657 = vmatprep.subr.mxu0 0.0
          %658 = vmatpush1.msra.mxu0 0.0
          %659 = vmatprep.subr.mxu0 0.0
          %660 = vmatpush1.msra.mxu0 0.0
          %661 = vmatprep.subr.mxu0 0.0
          %662 = vmatpush1.msra.mxu0 0.0
          %663 = vmatprep.subr.mxu0 0.0
          %664 = vmatpush1.msra.mxu0 0.0
          %665 = vmatprep.subr.mxu0 0.0
          %666 = vmatpush1.msra.mxu0 0.0
          %667 = vmatprep.subr.mxu0 0.0
          %668 = vmatpush1.msra.mxu0 0.0
          %669 = vmatprep.subr.mxu0 0.0
          %670 = vmatpush1.msra.mxu0 0.0
          %671 = vmatprep.subr.mxu0 0.0
          %672 = vmatpush1.msra.mxu0 0.0
          %673 = vmatprep.subr.mxu0 0.0
          %674 = vmatpush1.msra.mxu0 0.0
          %675 = vmatprep.mubr.f32.mxu0 0.0
          %676 = vmatmul.mubr.f32.gmra.mrb[0].mxu0 %v593
          %v677 = vpop.f32.mrb[0].mxu0
          %v678 = vadd.f32 0.0, %v677
          %v679 = vpop.f32.mrb[0].mxu0
          %680 = vmatprep.mubr.f32.mxu0 0.0
          %681 = vmatmul.mubr.f32.gmra.mrb[0].mxu0 %v594
          %v682 = vpop.f32.mrb[0].mxu0
          %v683 = vadd.f32 0.0, %v682
          %v684 = vpop.f32.mrb[0].mxu0
          %685 = vdwg.mxu0
          %v686 = vld [vmem:[#allocation2] sm:$0xff]
          %v687 = vld [vmem:[#allocation2 + $0x8] sm:$0xff]
          %v688 = vadd.f32 %v686, %v678
          %v689 = vadd.f32 %v687, %v683
          %v690 = vld [vmem:[%s476] sm:$0x1]
          %v692 = vlaneseq
          %v693 = vshrl.u32 %v692, 7
          %v694 = vsub.s32 0, %v693
          %v695 = vrot.slane %v690, %v694
          %v697 = vadd.f32 %v688, %v695
          %v698 = vadd.f32 %v689, %v695
          %699 = vst [vmem:[%s471] sm:$0xff] %v697
          %700 = vst [vmem:[%s471 + $0x8] sm:$0xff] %v698
        $region128: #{_lora_linear_apply.1} parent=107 // pred_fallthru
          _
        %s701 = sand.u32 %s185, 1
        %s702 = scalar_lea.sflag [#allocation7], %s701
        %s703 = sand.u32 %s185, 1
        %s704 = smul.addr %s703, 16
        %s705 = scalar_lea.vmem [#allocation8], %s704
        // Predicated region
        $region129: #{_lora_linear_apply.1} parent=107 // pred_check
          %p706 = pneg %p195
        $region130: #{_lora_linear_apply.1} parent=107 // pred_check_branch
          %708 = sbr.rel (%p706) target = $region132
        $region131: #{_lora_linear_apply.1} parent=107 // pred_region
          %s709 = smul.u32 2, %s27
          %s711 = ssub.s32 256, 256
          %712 = vsyncadd %s702, %s711
          %s713 = smul.addr %s709, 2
          %s714 = sadd.s32 %s28, %s713
          %s715 = smul.addr %s714, 128
          %s716 = scalar_lea.hbm %s5, %s715
          %s717 = sshll.u32 %s705, 4
          %s718 = int_to_ptr.vmem [resolvable:$true] %s717
          %723 = dma.vmem_to_hbm [thread:$0]  %s718, 256, %s716, %s702, 128, 256, 8
        $region132: #{_lora_linear_apply.1} parent=107 // pred_fallthru
          _
      $region108: #{_lora_linear_apply.1} parent=5 // pred_fallthru
        _
      %p724 = scmp.le.s32.totalorder 2, %s17
      // Predicated region
      $region133: #{_lora_linear_apply.1} parent=5 // pred_check
        %p725 = pneg %p724
      $region134: #{_lora_linear_apply.1} parent=5 // pred_check_branch
        %727 = sbr.rel (%p725) target = $region136
      $region135: #{_lora_linear_apply.1} parent=5 // pred_region
        %s728 = ssub.s32 %s17, 2
        // Predicated region
        $region137: #{_lora_linear_apply.1} parent=135 // pred_check
          %p729 = pneg %p201
        $region138: #{_lora_linear_apply.1} parent=135 // pred_check_branch
          %731 = sbr.rel (%p729) target = $region140
        $region139: #{_lora_linear_apply.1} parent=135 // pred_region
          %s732 = sand.u32 %s186, 1
          %s733 = scalar_lea.sflag [#allocation7], %s732
          %s734 = sand.u32 %s186, 1
          %s735 = smul.addr %s734, 16
          %s736 = scalar_lea.vmem [#allocation8], %s735
          %737 = dma.done %s733, 256
        $region140: #{_lora_linear_apply.1} parent=135 // pred_fallthru
          _
      $region136: #{_lora_linear_apply.1} parent=5 // pred_fallthru
        _
    $region6: #{_lora_linear_apply.1} parent=1 // loop_footer
      %s21 = sadd.s32 1, %s17
    $region7: #{_lora_linear_apply.1} parent=1 // loop_footer_branch
      %16 = sbr.rel target = $region3
    $region8: #{_lora_linear_apply.1} parent=1 // loop_exit
      _
    %738 = vsyncpa [#allocation6], 1
    %s739 = scalar_lea.sflag [#allocation6], 1
    %740 = vsyncpa %s739, 1
    %741 = vsyncpa [#allocation7], 1
    %s742 = scalar_lea.sflag [#allocation7], 1
    %743 = vsyncpa %s742, 1

</llo_original>
